<compile_context>
chip_gen: v6e
topology: v6e:2x2x1
jax: 0.10.0
libtpu: 0.0.40
codegen_flags: <defaults>
</compile_context>

<pallas_src>
import functools

import jax
import jax.numpy as jnp
from jax.experimental import pallas as pl
from jax.experimental.pallas import tpu as pltpu


IN_DIM = 28 * 28   # 784
HID = 64
HID_PAD = 128      # lane-padded hidden width (full 128-lane vregs / MXU lanes)
OUT_DIM = 10


def _mlp_kernel(x_ref, w1_ref, b1_ref, w2_ref, b2_ref,
                w3_ref, b3_ref, w4_ref, b4_ref, out_ref):
    cdt = w1_ref.dtype  # MXU-operand compute dtype (bf16 or f32)

    # x arrives as f32 from HBM (no separate wrapper cast pass); cast in-vreg.
    x = x_ref[...].astype(cdt)

    # fc1 + ReLU   (bf16 matmul, f32 accumulate / elementwise)
    h = jnp.dot(x, w1_ref[...], preferred_element_type=jnp.float32) + b1_ref[...]
    h = jnp.maximum(h, 0.0).astype(cdt)

    # fc2 + ReLU
    h = jnp.dot(h, w2_ref[...], preferred_element_type=jnp.float32) + b2_ref[...]
    h = jnp.maximum(h, 0.0).astype(cdt)

    # fc3 + ReLU
    h = jnp.dot(h, w3_ref[...], preferred_element_type=jnp.float32) + b3_ref[...]
    h = jnp.maximum(h, 0.0).astype(cdt)

    # fc4 (no activation)
    logits = jnp.dot(h, w4_ref[...], preferred_element_type=jnp.float32) + b4_ref[...]

    # log_softmax over dim=1 (last axis), numerically stable, f32
    m = jnp.max(logits, axis=-1, keepdims=True)
    z = logits - m
    lse = jnp.log(jnp.sum(jnp.exp(z), axis=-1, keepdims=True))
    out_ref[...] = (z - lse).astype(out_ref.dtype)


def _round_up(n, m):
    return ((n + m - 1) // m) * m


@functools.partial(jax.jit, static_argnames=("tm", "use_bf16"))
def net_forward(x, params, *, tm=2048, use_bf16=True):
    """x: (B, 784) float32. params: weights (in,out) f32, biases (1,out) f32.

    Returns (B, 10) float32 log-probabilities, matching the PyTorch Net forward.
    """
    B = x.shape[0]
    cdt = jnp.bfloat16 if use_bf16 else jnp.float32
    hpad = HID_PAD - HID

    # One-time weight prep (tiny vs x traffic): cast MXU operands to the
    # compute dtype and zero-pad the 64-wide hidden layers to 128 lanes.
    w1 = jnp.pad(params["w1"], ((0, 0), (0, hpad))).astype(cdt)
    w2 = jnp.pad(params["w2"], ((0, hpad), (0, hpad))).astype(cdt)
    w3 = jnp.pad(params["w3"], ((0, hpad), (0, hpad))).astype(cdt)
    w4 = jnp.pad(params["w4"], ((0, hpad), (0, 0))).astype(cdt)
    b1 = jnp.pad(params["b1"], ((0, 0), (0, hpad))).astype(jnp.float32)
    b2 = jnp.pad(params["b2"], ((0, 0), (0, hpad))).astype(jnp.float32)
    b3 = jnp.pad(params["b3"], ((0, 0), (0, hpad))).astype(jnp.float32)
    b4 = params["b4"].astype(jnp.float32)

    # Batch tile selection: multiple of 8 (f32 sublane); capped so the grid has
    # >= 2 steps when B is large enough (two TensorCores on v7x); no padding of
    # x — Pallas masks the ragged last block.
    half = _round_up(max(1, -(-B // 2)), 8)
    TM = max(8, min(tm, half))
    grid = (pl.cdiv(B, TM),)

    # x / out tiled over the batch; weights & biases use constant index_maps so
    # they stay resident in VMEM across grid steps.
    const = lambda i: (0, 0)
    in_specs = [
        pl.BlockSpec((TM, IN_DIM), lambda i: (i, 0)),
        pl.BlockSpec((IN_DIM, HID_PAD), const),
        pl.BlockSpec((1, HID_PAD), const),
        pl.BlockSpec((HID_PAD, HID_PAD), const),
        pl.BlockSpec((1, HID_PAD), const),
        pl.BlockSpec((HID_PAD, HID_PAD), const),
        pl.BlockSpec((1, HID_PAD), const),
        pl.BlockSpec((HID_PAD, OUT_DIM), const),
        pl.BlockSpec((1, OUT_DIM), const),
    ]
    out_specs = pl.BlockSpec((TM, OUT_DIM), lambda i: (i, 0))

    # VMEM budget: double-buffered x/out tiles + resident weights + headroom
    # for in-kernel intermediates; raise past the 16 MiB v5e default scope.
    x_itemsize = jnp.dtype(x.dtype).itemsize
    w_itemsize = jnp.dtype(cdt).itemsize
    w_elems = IN_DIM * HID_PAD + 2 * HID_PAD * HID_PAD + HID_PAD * OUT_DIM
    vmem_bytes = (2 * TM * IN_DIM * x_itemsize
                  + 2 * TM * OUT_DIM * 4
                  + w_elems * w_itemsize + 4 * HID_PAD * 4
                  + (16 << 20))
    vmem_bytes = int(min(vmem_bytes, 48 << 20))

    flops = 2 * B * w_elems
    bytes_accessed = (B * IN_DIM * x_itemsize + B * OUT_DIM * 4
                      + w_elems * w_itemsize)
    cost = pl.CostEstimate(flops=flops,
                           transcendentals=B * (OUT_DIM + 1),
                           bytes_accessed=bytes_accessed)

    out = pl.pallas_call(
        _mlp_kernel,
        out_shape=jax.ShapeDtypeStruct((B, OUT_DIM), jnp.float32),
        grid=grid,
        in_specs=in_specs,
        out_specs=out_specs,
        compiler_params=pltpu.CompilerParams(
            dimension_semantics=("parallel",),
            vmem_limit_bytes=vmem_bytes,
        ),
        cost_estimate=cost,
    )(x, w1, b1, w2, b2, w3, b3, w4, b4)

    return out


def net_reference(x, params):
    """Pure-JAX f32 reference for correctness checking."""
    h = x
    for i in (1, 2, 3):
        h = jnp.maximum(h @ params[f"w{i}"] + params[f"b{i}"], 0.0)
    logits = h @ params["w4"] + params["b4"]
    return jax.nn.log_softmax(logits, axis=1)


def init_params(key):
    """Deterministic init mimicking PyTorch Linear default: U(-1/sqrt(fan_in), +)."""
    dims = [(IN_DIM, HID), (HID, HID), (HID, HID), (HID, OUT_DIM)]
    params = {}
    keys = jax.random.split(key, 2 * len(dims))
    for i, (fan_in, fan_out) in enumerate(dims):
        bound = 1.0 / jnp.sqrt(jnp.float32(fan_in))
        w = jax.random.uniform(keys[2 * i], (fan_in, fan_out),
                               minval=-bound, maxval=bound, dtype=jnp.float32)
        b = jax.random.uniform(keys[2 * i + 1], (1, fan_out),
                               minval=-bound, maxval=bound, dtype=jnp.float32)
        params[f"w{i + 1}"] = w
        params[f"b{i + 1}"] = b
    return params


if __name__ == "__main__":
    key = jax.random.PRNGKey(0)
    pkey, xkey1, xkey2, xkey3 = jax.random.split(key, 4)
    params = init_params(pkey)

    # --- small single-tile case (B=8, TM=8, grid=1) ---
    B1 = 8
    x1 = jax.random.normal(xkey1, (B1, IN_DIM), dtype=jnp.float32)
    out1 = jax.block_until_ready(net_forward(x1, params))
    ref1 = net_reference(x1, params)
    assert out1.shape == (B1, OUT_DIM)
    row_sums = jnp.sum(jnp.exp(out1), axis=1)
    assert bool(jnp.all(jnp.abs(row_sums - 1.0) < 1e-3))
    assert bool(jnp.max(jnp.abs(out1 - ref1)) < 5e-2)  # bf16 matmul tolerance

    # --- multi-step grid + ragged last block, no padding (B=40, TM forced 16) ---
    B2 = 40
    x2 = jax.random.normal(xkey2, (B2, IN_DIM), dtype=jnp.float32)
    out2 = jax.block_until_ready(net_forward(x2, params, tm=16))
    ref2 = net_reference(x2, params)
    assert out2.shape == (B2, OUT_DIM)
    assert bool(jnp.max(jnp.abs(out2 - ref2)) < 5e-2)

    # --- default tile path with >=2 grid steps and ragged last block (B=100) ---
    B3 = 100
    x3 = jax.random.normal(xkey3, (B3, IN_DIM), dtype=jnp.float32)
    out3 = jax.block_until_ready(net_forward(x3, params))
    ref3 = net_reference(x3, params)
    assert out3.shape == (B3, OUT_DIM)
    assert bool(jnp.max(jnp.abs(out3 - ref3)) < 5e-2)

    print("KERNEL_OK")
</pallas_src>

<mosaic_0001>
module attributes {stable_mosaic.version = 11 : i64} {
  func.func @_mlp_kernel(%arg0: i32, %arg1: memref<8x784xf32, #tpu.memory_space<vmem>>, %arg2: memref<784x128xbf16, #tpu.memory_space<vmem>>, %arg3: memref<1x128xf32, #tpu.memory_space<vmem>>, %arg4: memref<128x128xbf16, #tpu.memory_space<vmem>>, %arg5: memref<1x128xf32, #tpu.memory_space<vmem>>, %arg6: memref<128x128xbf16, #tpu.memory_space<vmem>>, %arg7: memref<1x128xf32, #tpu.memory_space<vmem>>, %arg8: memref<128x10xbf16, #tpu.memory_space<vmem>>, %arg9: memref<1x10xf32, #tpu.memory_space<vmem>>, %arg10: memref<8x10xf32, #tpu.memory_space<vmem>>) attributes {dimension_semantics = [#tpu.dimension_semantics<parallel>], iteration_bounds = array<i64: 1>, scalar_prefetch = 0 : i64, scratch_operands = 0 : i64, tpu.core_type = #tpu.core_type<tc>, window_params = [{transform_indices = @transform_0, window_bounds = array<i64: 8, 784>}, {pipeline_mode = #tpu.pipeline_mode<synchronous>, transform_indices = @transform_1, window_bounds = array<i64: 784, 128>}, {pipeline_mode = #tpu.pipeline_mode<synchronous>, transform_indices = @transform_2, window_bounds = array<i64: 1, 128>}, {pipeline_mode = #tpu.pipeline_mode<synchronous>, transform_indices = @transform_3, window_bounds = array<i64: 128, 128>}, {pipeline_mode = #tpu.pipeline_mode<synchronous>, transform_indices = @transform_4, window_bounds = array<i64: 1, 128>}, {pipeline_mode = #tpu.pipeline_mode<synchronous>, transform_indices = @transform_5, window_bounds = array<i64: 128, 128>}, {pipeline_mode = #tpu.pipeline_mode<synchronous>, transform_indices = @transform_6, window_bounds = array<i64: 1, 128>}, {pipeline_mode = #tpu.pipeline_mode<synchronous>, transform_indices = @transform_7, window_bounds = array<i64: 128, 10>}, {pipeline_mode = #tpu.pipeline_mode<synchronous>, transform_indices = @transform_8, window_bounds = array<i64: 1, 10>}, {transform_indices = @transform_9, window_bounds = array<i64: 8, 10>}]} {
    %c0 = arith.constant 0 : index
    %c0_0 = arith.constant 0 : index
    %0 = vector.load %arg1[%c0, %c0_0] : memref<8x784xf32, #tpu.memory_space<vmem>>, vector<8x784xf32>
    %1 = arith.truncf %0 : vector<8x784xf32> to vector<8x784xbf16>
    %c0_1 = arith.constant 0 : index
    %c0_2 = arith.constant 0 : index
    %2 = vector.load %arg2[%c0_1, %c0_2] : memref<784x128xbf16, #tpu.memory_space<vmem>>, vector<784x128xbf16>
    %cst = arith.constant dense<0.000000e+00> : vector<8x128xf32>
    %3 = tpu.matmul %1, %2, %cst {dimension_numbers = #tpu.dot_dimension_numbers<[1], [0], [0], [1], [0, 0, 1, 1], [], []>} : vector<8x784xbf16>, vector<784x128xbf16>, vector<8x128xf32> -> vector<8x128xf32>
    %c0_3 = arith.constant 0 : index
    %c0_4 = arith.constant 0 : index
    %4 = vector.load %arg3[%c0_3, %c0_4] : memref<1x128xf32, #tpu.memory_space<vmem>>, vector<1x128xf32>
    %5 = vector.broadcast %4 : vector<1x128xf32> to vector<8x128xf32>
    %6 = arith.addf %3, %5 : vector<8x128xf32>
    %cst_5 = arith.constant 0.000000e+00 : f32
    %7 = vector.broadcast %cst_5 : f32 to vector<8x128xf32>
    %8 = arith.maximumf %6, %7 : vector<8x128xf32>
    %9 = arith.truncf %8 : vector<8x128xf32> to vector<8x128xbf16>
    %c0_6 = arith.constant 0 : index
    %c0_7 = arith.constant 0 : index
    %10 = vector.load %arg4[%c0_6, %c0_7] : memref<128x128xbf16, #tpu.memory_space<vmem>>, vector<128x128xbf16>
    %cst_8 = arith.constant dense<0.000000e+00> : vector<8x128xf32>
    %11 = tpu.matmul %9, %10, %cst_8 {dimension_numbers = #tpu.dot_dimension_numbers<[1], [0], [0], [1], [0, 0, 1, 1], [], []>} : vector<8x128xbf16>, vector<128x128xbf16>, vector<8x128xf32> -> vector<8x128xf32>
    %c0_9 = arith.constant 0 : index
    %c0_10 = arith.constant 0 : index
    %12 = vector.load %arg5[%c0_9, %c0_10] : memref<1x128xf32, #tpu.memory_space<vmem>>, vector<1x128xf32>
    %13 = vector.broadcast %12 : vector<1x128xf32> to vector<8x128xf32>
    %14 = arith.addf %11, %13 : vector<8x128xf32>
    %cst_11 = arith.constant 0.000000e+00 : f32
    %15 = vector.broadcast %cst_11 : f32 to vector<8x128xf32>
    %16 = arith.maximumf %14, %15 : vector<8x128xf32>
    %17 = arith.truncf %16 : vector<8x128xf32> to vector<8x128xbf16>
    %c0_12 = arith.constant 0 : index
    %c0_13 = arith.constant 0 : index
    %18 = vector.load %arg6[%c0_12, %c0_13] : memref<128x128xbf16, #tpu.memory_space<vmem>>, vector<128x128xbf16>
    %cst_14 = arith.constant dense<0.000000e+00> : vector<8x128xf32>
    %19 = tpu.matmul %17, %18, %cst_14 {dimension_numbers = #tpu.dot_dimension_numbers<[1], [0], [0], [1], [0, 0, 1, 1], [], []>} : vector<8x128xbf16>, vector<128x128xbf16>, vector<8x128xf32> -> vector<8x128xf32>
    %c0_15 = arith.constant 0 : index
    %c0_16 = arith.constant 0 : index
    %20 = vector.load %arg7[%c0_15, %c0_16] : memref<1x128xf32, #tpu.memory_space<vmem>>, vector<1x128xf32>
    %21 = vector.broadcast %20 : vector<1x128xf32> to vector<8x128xf32>
    %22 = arith.addf %19, %21 : vector<8x128xf32>
    %cst_17 = arith.constant 0.000000e+00 : f32
    %23 = vector.broadcast %cst_17 : f32 to vector<8x128xf32>
    %24 = arith.maximumf %22, %23 : vector<8x128xf32>
    %25 = arith.truncf %24 : vector<8x128xf32> to vector<8x128xbf16>
    %c0_18 = arith.constant 0 : index
    %c0_19 = arith.constant 0 : index
    %26 = vector.load %arg8[%c0_18, %c0_19] : memref<128x10xbf16, #tpu.memory_space<vmem>>, vector<128x10xbf16>
    %cst_20 = arith.constant dense<0.000000e+00> : vector<8x10xf32>
    %27 = tpu.matmul %25, %26, %cst_20 {dimension_numbers = #tpu.dot_dimension_numbers<[1], [0], [0], [1], [0, 0, 1, 1], [], []>} : vector<8x128xbf16>, vector<128x10xbf16>, vector<8x10xf32> -> vector<8x10xf32>
    %c0_21 = arith.constant 0 : index
    %c0_22 = arith.constant 0 : index
    %28 = vector.load %arg9[%c0_21, %c0_22] : memref<1x10xf32, #tpu.memory_space<vmem>>, vector<1x10xf32>
    %29 = vector.broadcast %28 : vector<1x10xf32> to vector<8x10xf32>
    %30 = arith.addf %27, %29 : vector<8x10xf32>
    %cst_23 = arith.constant dense<0xFF800000> : vector<8xf32>
    %31 = vector.multi_reduction <maximumf>, %30, %cst_23 [1] : vector<8x10xf32> to vector<8xf32>
    %32 = vector.shape_cast %31 : vector<8xf32> to vector<8x1xf32>
    %33 = vector.broadcast %32 : vector<8x1xf32> to vector<8x10xf32>
    %34 = arith.subf %30, %33 : vector<8x10xf32>
    %35 = math.exp %34 : vector<8x10xf32>
    %cst_24 = arith.constant dense<0.000000e+00> : vector<8xf32>
    %36 = vector.multi_reduction <add>, %35, %cst_24 [1] : vector<8x10xf32> to vector<8xf32>
    %37 = vector.shape_cast %36 : vector<8xf32> to vector<8x1xf32>
    %38 = math.log %37 : vector<8x1xf32>
    %39 = vector.broadcast %38 : vector<8x1xf32> to vector<8x10xf32>
    %40 = arith.subf %34, %39 : vector<8x10xf32>
    %c0_25 = arith.constant 0 : index
    %c0_26 = arith.constant 0 : index
    %41 = vector.load %arg10[%c0_25, %c0_26] : memref<8x10xf32, #tpu.memory_space<vmem>>, vector<8x10xf32>
    tpu.vector_store %arg10[%c0_25, %c0_26], %40 {strides = array<i32>} : memref<8x10xf32, #tpu.memory_space<vmem>>, vector<8x10xf32>,
    return
  }
  func.func @transform_0(%arg0: i32) -> (i32, i32) {
    %c0_i32 = arith.constant 0 : i32
    %c0_i32_0 = arith.constant 0 : i32
    return %arg0, %c0_i32 : i32, i32
  }
  func.func @transform_1(%arg0: i32) -> (i32, i32) {
    %c0_i32 = arith.constant 0 : i32
    %c0_i32_0 = arith.constant 0 : i32
    %c0_i32_1 = arith.constant 0 : i32
    return %c0_i32, %c0_i32_0 : i32, i32
  }
  func.func @transform_2(%arg0: i32) -> (i32, i32) {
    %c0_i32 = arith.constant 0 : i32
    %c0_i32_0 = arith.constant 0 : i32
    %c0_i32_1 = arith.constant 0 : i32
    return %c0_i32, %c0_i32_0 : i32, i32
  }
  func.func @transform_3(%arg0: i32) -> (i32, i32) {
    %c0_i32 = arith.constant 0 : i32
    %c0_i32_0 = arith.constant 0 : i32
    %c0_i32_1 = arith.constant 0 : i32
    return %c0_i32, %c0_i32_0 : i32, i32
  }
  func.func @transform_4(%arg0: i32) -> (i32, i32) {
    %c0_i32 = arith.constant 0 : i32
    %c0_i32_0 = arith.constant 0 : i32
    %c0_i32_1 = arith.constant 0 : i32
    return %c0_i32, %c0_i32_0 : i32, i32
  }
  func.func @transform_5(%arg0: i32) -> (i32, i32) {
    %c0_i32 = arith.constant 0 : i32
    %c0_i32_0 = arith.constant 0 : i32
    %c0_i32_1 = arith.constant 0 : i32
    return %c0_i32, %c0_i32_0 : i32, i32
  }
  func.func @transform_6(%arg0: i32) -> (i32, i32) {
    %c0_i32 = arith.constant 0 : i32
    %c0_i32_0 = arith.constant 0 : i32
    %c0_i32_1 = arith.constant 0 : i32
    return %c0_i32, %c0_i32_0 : i32, i32
  }
  func.func @transform_7(%arg0: i32) -> (i32, i32) {
    %c0_i32 = arith.constant 0 : i32
    %c0_i32_0 = arith.constant 0 : i32
    %c0_i32_1 = arith.constant 0 : i32
    return %c0_i32, %c0_i32_0 : i32, i32
  }
  func.func @transform_8(%arg0: i32) -> (i32, i32) {
    %c0_i32 = arith.constant 0 : i32
    %c0_i32_0 = arith.constant 0 : i32
    %c0_i32_1 = arith.constant 0 : i32
    return %c0_i32, %c0_i32_0 : i32, i32
  }
  func.func @transform_9(%arg0: i32) -> (i32, i32) {
    %c0_i32 = arith.constant 0 : i32
    %c0_i32_0 = arith.constant 0 : i32
    return %arg0, %c0_i32 : i32, i32
  }
}

</mosaic_0001>

<llo_original>
// kernel: net_forward.1
$region0: #{net_forward.1}
  #allocation0 [shape = 'u32[]', space=smem, size = 0x4, offset = 0x4, fixed_abs, tag = 'smem constant byte address 0x4 - core index']
  #allocation1 [shape = 'u32[144,128]{1,0:T(1,128)}', space=vmem, size = 0x12000, scoped, tag = 'internal scratch']
  %s0 = inlined_call_operand.vmem [shape: f32[8,784], index: 0, kind: input, shape index: {}]
  %s1 = inlined_call_operand.vmem [shape: bf16[784,128], index: 1, kind: input, shape index: {}]
  %s2 = inlined_call_operand.vmem [shape: f32[1,128], index: 2, kind: input, shape index: {}]
  %s3 = inlined_call_operand.vmem [shape: bf16[128,128], index: 3, kind: input, shape index: {}]
  %s4 = inlined_call_operand.vmem [shape: f32[1,128], index: 4, kind: input, shape index: {}]
  %s5 = inlined_call_operand.vmem [shape: bf16[128,128], index: 5, kind: input, shape index: {}]
  %s6 = inlined_call_operand.vmem [shape: f32[1,128], index: 6, kind: input, shape index: {}]
  %s7 = inlined_call_operand.vmem [shape: bf16[128,10], index: 7, kind: input, shape index: {}]
  %s8 = inlined_call_operand.vmem [shape: f32[1,10], index: 8, kind: input, shape index: {}]
  %s9 = inlined_call_operand.hbm [shape: f32[8,10], index: 9, kind: output, shape index: {}]
  %s10 = sld [smem:[#allocation0]]
  $region46: #{net_forward.1} parent=0
    _
  %s12 = ssub.s32 1, %s10
  %s13 = scalar_select 0, %s12, %s10
  $region1: #{net_forward.1} parent=0
    #allocation2 [shape = 'u8[4096]{0}', space=vmem, size = 0x1000, scoped, tag = 'output window, operand 0, single buffered']
    #allocation3 [shape = 's32[1]{0}', space=sflag, size = 0x4, scoped, tag = 'scoped memory for net_forward.1']
    %14 = vsyncpa [#allocation3], 0
    // Predicated region
    $region2: #{net_forward.1} parent=1 // pred_check
      _
    $region3: #{net_forward.1} parent=1 // pred_check_branch
      %16 = sbr.rel (0) target = $region5
    $region4: #{net_forward.1} parent=1 // pred_region
      _
    $region5: #{net_forward.1} parent=1 // pred_fallthru
      _
    // Predicated region
    $region6: #{net_forward.1} parent=1 // pred_check
      _
    $region7: #{net_forward.1} parent=1 // pred_check_branch
      %18 = sbr.rel (0) target = $region9
    $region8: #{net_forward.1} parent=1 // pred_region
      _
    $region9: #{net_forward.1} parent=1 // pred_fallthru
      _
    // Predicated region
    $region10: #{net_forward.1} parent=1 // pred_check
      _
    $region11: #{net_forward.1} parent=1 // pred_check_branch
      %20 = sbr.rel (0) target = $region13
    $region12: #{net_forward.1} parent=1 // pred_region
      _
    $region13: #{net_forward.1} parent=1 // pred_fallthru
      _
    // Predicated region
    $region14: #{net_forward.1} parent=1 // pred_check
      _
    $region15: #{net_forward.1} parent=1 // pred_check_branch
      %22 = sbr.rel (0) target = $region17
    $region16: #{net_forward.1} parent=1 // pred_region
      _
    $region17: #{net_forward.1} parent=1 // pred_fallthru
      _
    // Predicated region
    $region18: #{net_forward.1} parent=1 // pred_check
      _
    $region19: #{net_forward.1} parent=1 // pred_check_branch
      %24 = sbr.rel (0) target = $region21
    $region20: #{net_forward.1} parent=1 // pred_region
      _
    $region21: #{net_forward.1} parent=1 // pred_fallthru
      _
    // Predicated region
    $region22: #{net_forward.1} parent=1 // pred_check
      _
    $region23: #{net_forward.1} parent=1 // pred_check_branch
      %26 = sbr.rel (0) target = $region25
    $region24: #{net_forward.1} parent=1 // pred_region
      _
    $region25: #{net_forward.1} parent=1 // pred_fallthru
      _
    // Predicated region
    $region26: #{net_forward.1} parent=1 // pred_check
      _
    $region27: #{net_forward.1} parent=1 // pred_check_branch
      %28 = sbr.rel (0) target = $region29
    $region28: #{net_forward.1} parent=1 // pred_region
      _
    $region29: #{net_forward.1} parent=1 // pred_fallthru
      _
    // Predicated region
    $region30: #{net_forward.1} parent=1 // pred_check
      _
    $region31: #{net_forward.1} parent=1 // pred_check_branch
      %30 = sbr.rel (0) target = $region33
    $region32: #{net_forward.1} parent=1 // pred_region
      _
    $region33: #{net_forward.1} parent=1 // pred_fallthru
      _
    // Predicated region
    $region34: #{net_forward.1} parent=1 // pred_check
      _
    $region35: #{net_forward.1} parent=1 // pred_check_branch
      %32 = sbr.rel (0) target = $region37
    $region36: #{net_forward.1} parent=1 // pred_region
      _
    $region37: #{net_forward.1} parent=1 // pred_fallthru
      _
    %v34 = vld [vmem:[%s0] sm:$0xff]
    %v35 = vld [vmem:[%s0 + $0x8] sm:$0xff]
    %v36 = vld [vmem:[%s0 + $0x10] sm:$0xff]
    %v37 = vld [vmem:[%s0 + $0x18] sm:$0xff]
    %v38 = vld [vmem:[%s0 + $0x20] sm:$0xff]
    %v39 = vld [vmem:[%s0 + $0x28] sm:$0xff]
    %v40 = vld [vmem:[%s0 + $0x30] sm:$0xff]
    %v41 = vpack.c.bf16 %v34, %v34
    %v42 = vpack.c.bf16 %v35, %v35
    %v43 = vpack.c.bf16 %v36, %v36
    %v44 = vpack.c.bf16 %v37, %v37
    %v45 = vpack.c.bf16 %v38, %v38
    %v46 = vpack.c.bf16 %v39, %v39
    %v47 = vpack.c.bf16 %v40, %v40
    %v48 = vld [vmem:[%s1] sm:$0xf]
    %v49 = vld [vmem:[%s1 + $0x4] sm:$0xf]
    %v50 = vld [vmem:[%s1 + $0x8] sm:$0xf]
    %v51 = vld [vmem:[%s1 + $0xc] sm:$0xf]
    %v52 = vld [vmem:[%s1 + $0x10] sm:$0xf]
    %v53 = vld [vmem:[%s1 + $0x14] sm:$0xf]
    %v54 = vld [vmem:[%s1 + $0x18] sm:$0xf]
    %v55 = vld [vmem:[%s1 + $0x1c] sm:$0xf]
    %v56 = vld [vmem:[%s1 + $0x20] sm:$0xf]
    %v57 = vld [vmem:[%s1 + $0x24] sm:$0xf]
    %v58 = vld [vmem:[%s1 + $0x28] sm:$0xf]
    %v59 = vld [vmem:[%s1 + $0x2c] sm:$0xf]
    %v60 = vld [vmem:[%s1 + $0x30] sm:$0xf]
    %v61 = vld [vmem:[%s1 + $0x34] sm:$0xf]
    %v62 = vld [vmem:[%s1 + $0x38] sm:$0xf]
    %v63 = vld [vmem:[%s1 + $0x3c] sm:$0xf]
    %v64 = vld [vmem:[%s1 + $0x40] sm:$0xf]
    %v65 = vld [vmem:[%s1 + $0x44] sm:$0xf]
    %v66 = vld [vmem:[%s1 + $0x48] sm:$0xf]
    %v67 = vld [vmem:[%s1 + $0x4c] sm:$0xf]
    %v68 = vld [vmem:[%s1 + $0x50] sm:$0xf]
    %v69 = vld [vmem:[%s1 + $0x54] sm:$0xf]
    %v70 = vld [vmem:[%s1 + $0x58] sm:$0xf]
    %v71 = vld [vmem:[%s1 + $0x5c] sm:$0xf]
    %v72 = vld [vmem:[%s1 + $0x60] sm:$0xf]
    %v73 = vld [vmem:[%s1 + $0x64] sm:$0xf]
    %v74 = vld [vmem:[%s1 + $0x68] sm:$0xf]
    %v75 = vld [vmem:[%s1 + $0x6c] sm:$0xf]
    %v76 = vld [vmem:[%s1 + $0x70] sm:$0xf]
    %v77 = vld [vmem:[%s1 + $0x74] sm:$0xf]
    %v78 = vld [vmem:[%s1 + $0x78] sm:$0xf]
    %v79 = vld [vmem:[%s1 + $0x7c] sm:$0xf]
    %v80 = vld [vmem:[%s1 + $0x80] sm:$0xf]
    %v81 = vld [vmem:[%s1 + $0x84] sm:$0xf]
    %v82 = vld [vmem:[%s1 + $0x88] sm:$0xf]
    %v83 = vld [vmem:[%s1 + $0x8c] sm:$0xf]
    %v84 = vld [vmem:[%s1 + $0x90] sm:$0xf]
    %v85 = vld [vmem:[%s1 + $0x94] sm:$0xf]
    %v86 = vld [vmem:[%s1 + $0x98] sm:$0xf]
    %v87 = vld [vmem:[%s1 + $0x9c] sm:$0xf]
    %v88 = vld [vmem:[%s1 + $0xa0] sm:$0xf]
    %v89 = vld [vmem:[%s1 + $0xa4] sm:$0xf]
    %v90 = vld [vmem:[%s1 + $0xa8] sm:$0xf]
    %v91 = vld [vmem:[%s1 + $0xac] sm:$0xf]
    %v92 = vld [vmem:[%s1 + $0xb0] sm:$0xf]
    %v93 = vld [vmem:[%s1 + $0xb4] sm:$0xf]
    %v94 = vld [vmem:[%s1 + $0xb8] sm:$0xf]
    %v95 = vld [vmem:[%s1 + $0xbc] sm:$0xf]
    %v96 = vld [vmem:[%s1 + $0xc0] sm:$0xf]
    %v97 = vld [vmem:[%s1 + $0xc4] sm:$0xf]
    %v98 = vld [vmem:[%s1 + $0xc8] sm:$0xf]
    %v99 = vld [vmem:[%s1 + $0xcc] sm:$0xf]
    %v100 = vld [vmem:[%s1 + $0xd0] sm:$0xf]
    %v101 = vld [vmem:[%s1 + $0xd4] sm:$0xf]
    %v102 = vld [vmem:[%s1 + $0xd8] sm:$0xf]
    %v103 = vld [vmem:[%s1 + $0xdc] sm:$0xf]
    %v104 = vld [vmem:[%s1 + $0xe0] sm:$0xf]
    %v105 = vld [vmem:[%s1 + $0xe4] sm:$0xf]
    %v106 = vld [vmem:[%s1 + $0xe8] sm:$0xf]
    %v107 = vld [vmem:[%s1 + $0xec] sm:$0xf]
    %v108 = vld [vmem:[%s1 + $0xf0] sm:$0xf]
    %v109 = vld [vmem:[%s1 + $0xf4] sm:$0xf]
    %v110 = vld [vmem:[%s1 + $0xf8] sm:$0xf]
    %v111 = vld [vmem:[%s1 + $0xfc] sm:$0xf]
    %v112 = vld [vmem:[%s1 + $0x100] sm:$0xf]
    %v113 = vld [vmem:[%s1 + $0x104] sm:$0xf]
    %v114 = vld [vmem:[%s1 + $0x108] sm:$0xf]
    %v115 = vld [vmem:[%s1 + $0x10c] sm:$0xf]
    %v116 = vld [vmem:[%s1 + $0x110] sm:$0xf]
    %v117 = vld [vmem:[%s1 + $0x114] sm:$0xf]
    %v118 = vld [vmem:[%s1 + $0x118] sm:$0xf]
    %v119 = vld [vmem:[%s1 + $0x11c] sm:$0xf]
    %v120 = vld [vmem:[%s1 + $0x120] sm:$0xf]
    %v121 = vld [vmem:[%s1 + $0x124] sm:$0xf]
    %v122 = vld [vmem:[%s1 + $0x128] sm:$0xf]
    %v123 = vld [vmem:[%s1 + $0x12c] sm:$0xf]
    %v124 = vld [vmem:[%s1 + $0x130] sm:$0xf]
    %v125 = vld [vmem:[%s1 + $0x134] sm:$0xf]
    %v126 = vld [vmem:[%s1 + $0x138] sm:$0xf]
    %v127 = vld [vmem:[%s1 + $0x13c] sm:$0xf]
    %v128 = vld [vmem:[%s1 + $0x140] sm:$0xf]
    %v129 = vld [vmem:[%s1 + $0x144] sm:$0xf]
    %v130 = vld [vmem:[%s1 + $0x148] sm:$0xf]
    %v131 = vld [vmem:[%s1 + $0x14c] sm:$0xf]
    %v132 = vld [vmem:[%s1 + $0x150] sm:$0xf]
    %v133 = vld [vmem:[%s1 + $0x154] sm:$0xf]
    %v134 = vld [vmem:[%s1 + $0x158] sm:$0xf]
    %v135 = vld [vmem:[%s1 + $0x15c] sm:$0xf]
    %v136 = vld [vmem:[%s1 + $0x160] sm:$0xf]
    %v137 = vld [vmem:[%s1 + $0x164] sm:$0xf]
    %v138 = vld [vmem:[%s1 + $0x168] sm:$0xf]
    %v139 = vld [vmem:[%s1 + $0x16c] sm:$0xf]
    %v140 = vld [vmem:[%s1 + $0x170] sm:$0xf]
    %v141 = vld [vmem:[%s1 + $0x174] sm:$0xf]
    %v142 = vld [vmem:[%s1 + $0x178] sm:$0xf]
    %v143 = vld [vmem:[%s1 + $0x17c] sm:$0xf]
    %v144 = vld [vmem:[%s1 + $0x180] sm:$0xf]
    %v145 = vld [vmem:[%s1 + $0x184] sm:$0xf]
    %v146 = vld [vmem:[%s2] sm:$0x1]
    %v148 = vlaneseq
    %v149 = vshrl.u32 %v148, 7
    %v150 = vsub.s32 0, %v149
    %v151 = vrot.slane %v146, %v150
    %v251 = vunpack.c.l.b16 %v48
    %v252 = vunpack.c.l.b16 %v49
    %v253 = vunpack.c.l.b16 %v50
    %v254 = vunpack.c.l.b16 %v51
    %v255 = vunpack.c.l.b16 %v52
    %v256 = vunpack.c.l.b16 %v53
    %v257 = vunpack.c.l.b16 %v54
    %v258 = vunpack.c.l.b16 %v55
    %v259 = vunpack.c.l.b16 %v56
    %v260 = vunpack.c.l.b16 %v57
    %v261 = vunpack.c.l.b16 %v58
    %v262 = vunpack.c.l.b16 %v59
    %v263 = vunpack.c.l.b16 %v60
    %v264 = vunpack.c.l.b16 %v61
    %v265 = vunpack.c.l.b16 %v62
    %v266 = vunpack.c.l.b16 %v63
    %v267 = vunpack.c.l.b16 %v64
    %v268 = vunpack.c.l.b16 %v65
    %v269 = vunpack.c.l.b16 %v66
    %v270 = vunpack.c.l.b16 %v67
    %v271 = vunpack.c.l.b16 %v68
    %v272 = vunpack.c.l.b16 %v69
    %v273 = vunpack.c.l.b16 %v70
    %v274 = vunpack.c.l.b16 %v71
    %v275 = vunpack.c.l.b16 %v72
    %v276 = vunpack.c.l.b16 %v73
    %v277 = vunpack.c.l.b16 %v74
    %v278 = vunpack.c.l.b16 %v75
    %v279 = vunpack.c.l.b16 %v76
    %v280 = vunpack.c.l.b16 %v77
    %v281 = vunpack.c.l.b16 %v78
    %v282 = vunpack.c.l.b16 %v79
    %v283 = vunpack.c.l.b16 %v80
    %v284 = vunpack.c.l.b16 %v81
    %v285 = vunpack.c.l.b16 %v82
    %v286 = vunpack.c.l.b16 %v83
    %v287 = vunpack.c.l.b16 %v84
    %v288 = vunpack.c.l.b16 %v85
    %v289 = vunpack.c.l.b16 %v86
    %v290 = vunpack.c.l.b16 %v87
    %v291 = vunpack.c.l.b16 %v88
    %v292 = vunpack.c.l.b16 %v89
    %v293 = vunpack.c.l.b16 %v90
    %v294 = vunpack.c.l.b16 %v91
    %v295 = vunpack.c.l.b16 %v92
    %v296 = vunpack.c.l.b16 %v93
    %v297 = vunpack.c.l.b16 %v94
    %v298 = vunpack.c.l.b16 %v95
    %v299 = vunpack.c.l.b16 %v96
    %v300 = vunpack.c.l.b16 %v97
    %v301 = vunpack.c.l.b16 %v98
    %v302 = vunpack.c.l.b16 %v99
    %v303 = vunpack.c.l.b16 %v100
    %v304 = vunpack.c.l.b16 %v101
    %v305 = vunpack.c.l.b16 %v102
    %v306 = vunpack.c.l.b16 %v103
    %v307 = vunpack.c.l.b16 %v104
    %v308 = vunpack.c.l.b16 %v105
    %v309 = vunpack.c.l.b16 %v106
    %v310 = vunpack.c.l.b16 %v107
    %v311 = vunpack.c.l.b16 %v108
    %v312 = vunpack.c.l.b16 %v109
    %v313 = vunpack.c.l.b16 %v110
    %v314 = vunpack.c.l.b16 %v111
    %v315 = vunpack.c.l.b16 %v112
    %v316 = vunpack.c.l.b16 %v113
    %v317 = vunpack.c.l.b16 %v114
    %v318 = vunpack.c.l.b16 %v115
    %v319 = vunpack.c.l.b16 %v116
    %v320 = vunpack.c.l.b16 %v117
    %v321 = vunpack.c.l.b16 %v118
    %v322 = vunpack.c.l.b16 %v119
    %v323 = vunpack.c.l.b16 %v120
    %v324 = vunpack.c.l.b16 %v121
    %v325 = vunpack.c.l.b16 %v122
    %v326 = vunpack.c.l.b16 %v123
    %v327 = vunpack.c.l.b16 %v124
    %v328 = vunpack.c.l.b16 %v125
    %v329 = vunpack.c.l.b16 %v126
    %v330 = vunpack.c.l.b16 %v127
    %v331 = vunpack.c.l.b16 %v128
    %v332 = vunpack.c.l.b16 %v129
    %v333 = vunpack.c.l.b16 %v130
    %v334 = vunpack.c.l.b16 %v131
    %v335 = vunpack.c.l.b16 %v132
    %v336 = vunpack.c.l.b16 %v133
    %v337 = vunpack.c.l.b16 %v134
    %v338 = vunpack.c.l.b16 %v135
    %v339 = vunpack.c.l.b16 %v136
    %v340 = vunpack.c.l.b16 %v137
    %v341 = vunpack.c.l.b16 %v138
    %v342 = vunpack.c.l.b16 %v139
    %v343 = vunpack.c.l.b16 %v140
    %v344 = vunpack.c.l.b16 %v141
    %v345 = vunpack.c.l.b16 %v142
    %v346 = vunpack.c.l.b16 %v143
    %v347 = vunpack.c.l.b16 %v144
    %v348 = vunpack.c.l.b16 %v145
    %v349 = vpack.c.b16 %v252, %v251
    %v350 = vpack.c.b16 %v254, %v253
    %v351 = vpack.c.b16 %v256, %v255
    %v352 = vpack.c.b16 %v258, %v257
    %v353 = vpack.c.b16 %v260, %v259
    %v354 = vpack.c.b16 %v262, %v261
    %v355 = vpack.c.b16 %v264, %v263
    %v356 = vpack.c.b16 %v266, %v265
    %v357 = vpack.c.b16 %v268, %v267
    %v358 = vpack.c.b16 %v270, %v269
    %v359 = vpack.c.b16 %v272, %v271
    %v360 = vpack.c.b16 %v274, %v273
    %v361 = vpack.c.b16 %v276, %v275
    %v362 = vpack.c.b16 %v278, %v277
    %v363 = vpack.c.b16 %v280, %v279
    %v364 = vpack.c.b16 %v282, %v281
    %v365 = vpack.c.b16 %v284, %v283
    %v366 = vpack.c.b16 %v286, %v285
    %v367 = vpack.c.b16 %v288, %v287
    %v368 = vpack.c.b16 %v290, %v289
    %v369 = vpack.c.b16 %v292, %v291
    %v370 = vpack.c.b16 %v294, %v293
    %v371 = vpack.c.b16 %v296, %v295
    %v372 = vpack.c.b16 %v298, %v297
    %v373 = vpack.c.b16 %v300, %v299
    %v374 = vpack.c.b16 %v302, %v301
    %v375 = vpack.c.b16 %v304, %v303
    %v376 = vpack.c.b16 %v306, %v305
    %v377 = vpack.c.b16 %v308, %v307
    %v378 = vpack.c.b16 %v310, %v309
    %v379 = vpack.c.b16 %v312, %v311
    %v380 = vpack.c.b16 %v314, %v313
    %v381 = vpack.c.b16 %v316, %v315
    %v382 = vpack.c.b16 %v318, %v317
    %v383 = vpack.c.b16 %v320, %v319
    %v384 = vpack.c.b16 %v322, %v321
    %v385 = vpack.c.b16 %v324, %v323
    %v386 = vpack.c.b16 %v326, %v325
    %v387 = vpack.c.b16 %v328, %v327
    %v388 = vpack.c.b16 %v330, %v329
    %v389 = vpack.c.b16 %v332, %v331
    %v390 = vpack.c.b16 %v334, %v333
    %v391 = vpack.c.b16 %v336, %v335
    %v392 = vpack.c.b16 %v338, %v337
    %v393 = vpack.c.b16 %v340, %v339
    %v394 = vpack.c.b16 %v342, %v341
    %v395 = vpack.c.b16 %v344, %v343
    %v396 = vpack.c.b16 %v346, %v345
    %v397 = vpack.c.b16 %v348, %v347
    %vm447 = vcmask 130048
    %v449 = vsel %vm447, %v47, 0
    %451 = vmatprep.subr.bf16.mxu0 0
    %452 = vmatpush1.bf16.msra.mxu0 %v356
    %453 = vmatprep.subr.bf16.mxu0 0
    %454 = vmatpush1.bf16.msra.mxu0 %v355
    %455 = vmatprep.subr.bf16.mxu0 0
    %456 = vmatpush1.bf16.msra.mxu0 %v354
    %457 = vmatprep.subr.bf16.mxu0 0
    %458 = vmatpush1.bf16.msra.mxu0 %v353
    %459 = vmatprep.subr.bf16.mxu0 0
    %460 = vmatpush1.bf16.msra.mxu0 %v352
    %461 = vmatprep.subr.bf16.mxu0 0
    %462 = vmatpush1.bf16.msra.mxu0 %v351
    %463 = vmatprep.subr.bf16.mxu0 0
    %464 = vmatpush1.bf16.msra.mxu0 %v350
    %465 = vmatprep.subr.bf16.mxu0 0
    %466 = vmatpush1.bf16.msra.mxu0 %v349
    %467 = vmatprep.subr.bf16.mxu0 0
    %468 = vmatpush2.bf16.msra.mxu0 %v364
    %469 = vmatprep.subr.bf16.mxu0 0
    %470 = vmatpush2.bf16.msra.mxu0 %v363
    %471 = vmatprep.subr.bf16.mxu0 0
    %472 = vmatpush2.bf16.msra.mxu0 %v362
    %473 = vmatprep.subr.bf16.mxu0 0
    %474 = vmatpush2.bf16.msra.mxu0 %v361
    %475 = vmatprep.subr.bf16.mxu0 0
    %476 = vmatpush2.bf16.msra.mxu0 %v360
    %477 = vmatprep.subr.bf16.mxu0 0
    %478 = vmatpush2.bf16.msra.mxu0 %v359
    %479 = vmatprep.subr.bf16.mxu0 0
    %480 = vmatpush2.bf16.msra.mxu0 %v358
    %481 = vmatprep.subr.bf16.mxu0 0
    %482 = vmatpush2.bf16.msra.mxu0 %v357
    %483 = vmatprep.mubr.bf16.mxu0 %v42
    %484 = vmatmul.mubr.bf16.gmra.mxu0 %v41
    %v485 = vpop.f32.mrf.mxu0
    %v486 = vadd.f32 %v151, %v485
    %v487 = vpop.f32.mrf.mxu0
    %v488 = vpop.f32.mrf.mxu0
    %v489 = vpop.f32.mrf.mxu0
    %490 = vdwg.mxu0
    %491 = vmatprep.subr.bf16.mxu0 0
    %492 = vmatpush1.bf16.msra.mxu0 %v372
    %493 = vmatprep.subr.bf16.mxu0 0
    %494 = vmatpush1.bf16.msra.mxu0 %v371
    %495 = vmatprep.subr.bf16.mxu0 0
    %496 = vmatpush1.bf16.msra.mxu0 %v370
    %497 = vmatprep.subr.bf16.mxu0 0
    %498 = vmatpush1.bf16.msra.mxu0 %v369
    %499 = vmatprep.subr.bf16.mxu0 0
    %500 = vmatpush1.bf16.msra.mxu0 %v368
    %501 = vmatprep.subr.bf16.mxu0 0
    %502 = vmatpush1.bf16.msra.mxu0 %v367
    %503 = vmatprep.subr.bf16.mxu0 0
    %504 = vmatpush1.bf16.msra.mxu0 %v366
    %505 = vmatprep.subr.bf16.mxu0 0
    %506 = vmatpush1.bf16.msra.mxu0 %v365
    %507 = vmatprep.subr.bf16.mxu0 0
    %508 = vmatpush2.bf16.msra.mxu0 %v380
    %509 = vmatprep.subr.bf16.mxu0 0
    %510 = vmatpush2.bf16.msra.mxu0 %v379
    %511 = vmatprep.subr.bf16.mxu0 0
    %512 = vmatpush2.bf16.msra.mxu0 %v378
    %513 = vmatprep.subr.bf16.mxu0 0
    %514 = vmatpush2.bf16.msra.mxu0 %v377
    %515 = vmatprep.subr.bf16.mxu0 0
    %516 = vmatpush2.bf16.msra.mxu0 %v376
    %517 = vmatprep.subr.bf16.mxu0 0
    %518 = vmatpush2.bf16.msra.mxu0 %v375
    %519 = vmatprep.subr.bf16.mxu0 0
    %520 = vmatpush2.bf16.msra.mxu0 %v374
    %521 = vmatprep.subr.bf16.mxu0 0
    %522 = vmatpush2.bf16.msra.mxu0 %v373
    %523 = vmatprep.mubr.bf16.mxu0 %v44
    %524 = vmatmul.mubr.bf16.gmra.mxu0 %v43
    %v525 = vpop.f32.mrf.mxu0
    %v526 = vadd.f32 %v486, %v525
    %v527 = vpop.f32.mrf.mxu0
    %v528 = vpop.f32.mrf.mxu0
    %v529 = vpop.f32.mrf.mxu0
    %530 = vdwg.mxu0
    %531 = vmatprep.subr.bf16.mxu0 0
    %532 = vmatpush1.bf16.msra.mxu0 %v388
    %533 = vmatprep.subr.bf16.mxu0 0
    %534 = vmatpush1.bf16.msra.mxu0 %v387
    %535 = vmatprep.subr.bf16.mxu0 0
    %536 = vmatpush1.bf16.msra.mxu0 %v386
    %537 = vmatprep.subr.bf16.mxu0 0
    %538 = vmatpush1.bf16.msra.mxu0 %v385
    %539 = vmatprep.subr.bf16.mxu0 0
    %540 = vmatpush1.bf16.msra.mxu0 %v384
    %541 = vmatprep.subr.bf16.mxu0 0
    %542 = vmatpush1.bf16.msra.mxu0 %v383
    %543 = vmatprep.subr.bf16.mxu0 0
    %544 = vmatpush1.bf16.msra.mxu0 %v382
    %545 = vmatprep.subr.bf16.mxu0 0
    %546 = vmatpush1.bf16.msra.mxu0 %v381
    %547 = vmatprep.subr.bf16.mxu0 0
    %548 = vmatpush2.bf16.msra.mxu0 %v396
    %549 = vmatprep.subr.bf16.mxu0 0
    %550 = vmatpush2.bf16.msra.mxu0 %v395
    %551 = vmatprep.subr.bf16.mxu0 0
    %552 = vmatpush2.bf16.msra.mxu0 %v394
    %553 = vmatprep.subr.bf16.mxu0 0
    %554 = vmatpush2.bf16.msra.mxu0 %v393
    %555 = vmatprep.subr.bf16.mxu0 0
    %556 = vmatpush2.bf16.msra.mxu0 %v392
    %557 = vmatprep.subr.bf16.mxu0 0
    %558 = vmatpush2.bf16.msra.mxu0 %v391
    %559 = vmatprep.subr.bf16.mxu0 0
    %560 = vmatpush2.bf16.msra.mxu0 %v390
    %561 = vmatprep.subr.bf16.mxu0 0
    %562 = vmatpush2.bf16.msra.mxu0 %v389
    %563 = vmatprep.mubr.bf16.mxu0 %v46
    %564 = vmatmul.mubr.bf16.gmra.mxu0 %v45
    %v565 = vpop.f32.mrf.mxu0
    %v566 = vadd.f32 %v526, %v565
    %v567 = vpop.f32.mrf.mxu0
    %v568 = vpop.f32.mrf.mxu0
    %v569 = vpop.f32.mrf.mxu0
    %570 = vdwg.mxu0
    %571 = vmatprep.subr.bf16.mxu0 0
    %572 = vmatpush1.bf16.msra.mxu0 0
    %573 = vmatprep.subr.bf16.mxu0 0
    %574 = vmatpush1.bf16.msra.mxu0 0
    %575 = vmatprep.subr.bf16.mxu0 0
    %576 = vmatpush1.bf16.msra.mxu0 0
    %577 = vmatprep.subr.bf16.mxu0 0
    %578 = vmatpush1.bf16.msra.mxu0 0
    %579 = vmatprep.subr.bf16.mxu0 0
    %580 = vmatpush1.bf16.msra.mxu0 0
    %581 = vmatprep.subr.bf16.mxu0 0
    %582 = vmatpush1.bf16.msra.mxu0 0
    %583 = vmatprep.subr.bf16.mxu0 0
    %584 = vmatpush1.bf16.msra.mxu0 0
    %585 = vmatprep.subr.bf16.mxu0 0
    %586 = vmatpush1.bf16.msra.mxu0 %v397
    %587 = vmatprep.subr.bf16.mxu0 0
    %588 = vmatpush2.bf16.msra.mxu0 0
    %589 = vmatprep.subr.bf16.mxu0 0
    %590 = vmatpush2.bf16.msra.mxu0 0
    %591 = vmatprep.subr.bf16.mxu0 0
    %592 = vmatpush2.bf16.msra.mxu0 0
    %593 = vmatprep.subr.bf16.mxu0 0
    %594 = vmatpush2.bf16.msra.mxu0 0
    %595 = vmatprep.subr.bf16.mxu0 0
    %596 = vmatpush2.bf16.msra.mxu0 0
    %597 = vmatprep.subr.bf16.mxu0 0
    %598 = vmatpush2.bf16.msra.mxu0 0
    %599 = vmatprep.subr.bf16.mxu0 0
    %600 = vmatpush2.bf16.msra.mxu0 0
    %601 = vmatprep.subr.bf16.mxu0 0
    %602 = vmatpush2.bf16.msra.mxu0 0
    %603 = vmatprep.mubr.bf16.mxu0 0
    %604 = vmatmul.mubr.bf16.gmra.mxu0 %v449
    %v605 = vpop.f32.mrf.mxu0
    %v606 = vadd.f32 %v566, %v605
    %v607 = vpop.f32.mrf.mxu0
    %v608 = vpop.f32.mrf.mxu0
    %v609 = vpop.f32.mrf.mxu0
    %610 = vdwg.mxu0
    %v611 = vmax.f32 %v606, 0.0
    %v612 = vpack.c.bf16 %v611, %v611
    %v613 = vld [vmem:[%s3] sm:$0xf]
    %v614 = vld [vmem:[%s3 + $0x4] sm:$0xf]
    %v615 = vld [vmem:[%s3 + $0x8] sm:$0xf]
    %v616 = vld [vmem:[%s3 + $0xc] sm:$0xf]
    %v617 = vld [vmem:[%s3 + $0x10] sm:$0xf]
    %v618 = vld [vmem:[%s3 + $0x14] sm:$0xf]
    %v619 = vld [vmem:[%s3 + $0x18] sm:$0xf]
    %v620 = vld [vmem:[%s3 + $0x1c] sm:$0xf]
    %v621 = vld [vmem:[%s3 + $0x20] sm:$0xf]
    %v622 = vld [vmem:[%s3 + $0x24] sm:$0xf]
    %v623 = vld [vmem:[%s3 + $0x28] sm:$0xf]
    %v624 = vld [vmem:[%s3 + $0x2c] sm:$0xf]
    %v625 = vld [vmem:[%s3 + $0x30] sm:$0xf]
    %v626 = vld [vmem:[%s3 + $0x34] sm:$0xf]
    %v627 = vld [vmem:[%s3 + $0x38] sm:$0xf]
    %v628 = vld [vmem:[%s3 + $0x3c] sm:$0xf]
    %v629 = vld [vmem:[%s4] sm:$0x1]
    %v631 = vlaneseq
    %v632 = vshrl.u32 %v631, 7
    %v633 = vsub.s32 0, %v632
    %v634 = vrot.slane %v629, %v633
    %v652 = vunpack.c.l.b16 %v613
    %v653 = vunpack.c.l.b16 %v614
    %v654 = vunpack.c.l.b16 %v615
    %v655 = vunpack.c.l.b16 %v616
    %v656 = vunpack.c.l.b16 %v617
    %v657 = vunpack.c.l.b16 %v618
    %v658 = vunpack.c.l.b16 %v619
    %v659 = vunpack.c.l.b16 %v620
    %v660 = vunpack.c.l.b16 %v621
    %v661 = vunpack.c.l.b16 %v622
    %v662 = vunpack.c.l.b16 %v623
    %v663 = vunpack.c.l.b16 %v624
    %v664 = vunpack.c.l.b16 %v625
    %v665 = vunpack.c.l.b16 %v626
    %v666 = vunpack.c.l.b16 %v627
    %v667 = vunpack.c.l.b16 %v628
    %v668 = vpack.c.b16 %v653, %v652
    %v669 = vpack.c.b16 %v655, %v654
    %v670 = vpack.c.b16 %v657, %v656
    %v671 = vpack.c.b16 %v659, %v658
    %v672 = vpack.c.b16 %v661, %v660
    %v673 = vpack.c.b16 %v663, %v662
    %v674 = vpack.c.b16 %v665, %v664
    %v675 = vpack.c.b16 %v667, %v666
    %684 = vmatprep.subr.bf16.mxu0 0
    %685 = vmatpush1.bf16.msra.mxu0 %v675
    %686 = vmatprep.subr.bf16.mxu0 0
    %687 = vmatpush1.bf16.msra.mxu0 %v674
    %688 = vmatprep.subr.bf16.mxu0 0
    %689 = vmatpush1.bf16.msra.mxu0 %v673
    %690 = vmatprep.subr.bf16.mxu0 0
    %691 = vmatpush1.bf16.msra.mxu0 %v672
    %692 = vmatprep.subr.bf16.mxu0 0
    %693 = vmatpush1.bf16.msra.mxu0 %v671
    %694 = vmatprep.subr.bf16.mxu0 0
    %695 = vmatpush1.bf16.msra.mxu0 %v670
    %696 = vmatprep.subr.bf16.mxu0 0
    %697 = vmatpush1.bf16.msra.mxu0 %v669
    %698 = vmatprep.subr.bf16.mxu0 0
    %699 = vmatpush1.bf16.msra.mxu0 %v668
    %700 = vmatprep.subr.bf16.mxu0 0
    %701 = vmatpush2.bf16.msra.mxu0 0
    %702 = vmatprep.subr.bf16.mxu0 0
    %703 = vmatpush2.bf16.msra.mxu0 0
    %704 = vmatprep.subr.bf16.mxu0 0
    %705 = vmatpush2.bf16.msra.mxu0 0
    %706 = vmatprep.subr.bf16.mxu0 0
    %707 = vmatpush2.bf16.msra.mxu0 0
    %708 = vmatprep.subr.bf16.mxu0 0
    %709 = vmatpush2.bf16.msra.mxu0 0
    %710 = vmatprep.subr.bf16.mxu0 0
    %711 = vmatpush2.bf16.msra.mxu0 0
    %712 = vmatprep.subr.bf16.mxu0 0
    %713 = vmatpush2.bf16.msra.mxu0 0
    %714 = vmatprep.subr.bf16.mxu0 0
    %715 = vmatpush2.bf16.msra.mxu0 0
    %716 = vmatprep.mubr.bf16.mxu0 0
    %717 = vmatmul.mubr.bf16.gmra.mxu0 %v612
    %v718 = vpop.f32.mrf.mxu0
    %v719 = vadd.f32 %v634, %v718
    %v720 = vpop.f32.mrf.mxu0
    %v721 = vpop.f32.mrf.mxu0
    %v722 = vpop.f32.mrf.mxu0
    %723 = vdwg.mxu0
    %v724 = vmax.f32 %v719, 0.0
    %v725 = vpack.c.bf16 %v724, %v724
    %v726 = vld [vmem:[%s5] sm:$0xf]
    %v727 = vld [vmem:[%s5 + $0x4] sm:$0xf]
    %v728 = vld [vmem:[%s5 + $0x8] sm:$0xf]
    %v729 = vld [vmem:[%s5 + $0xc] sm:$0xf]
    %v730 = vld [vmem:[%s5 + $0x10] sm:$0xf]
    %v731 = vld [vmem:[%s5 + $0x14] sm:$0xf]
    %v732 = vld [vmem:[%s5 + $0x18] sm:$0xf]
    %v733 = vld [vmem:[%s5 + $0x1c] sm:$0xf]
    %v734 = vld [vmem:[%s5 + $0x20] sm:$0xf]
    %v735 = vld [vmem:[%s5 + $0x24] sm:$0xf]
    %v736 = vld [vmem:[%s5 + $0x28] sm:$0xf]
    %v737 = vld [vmem:[%s5 + $0x2c] sm:$0xf]
    %v738 = vld [vmem:[%s5 + $0x30] sm:$0xf]
    %v739 = vld [vmem:[%s5 + $0x34] sm:$0xf]
    %v740 = vld [vmem:[%s5 + $0x38] sm:$0xf]
    %v741 = vld [vmem:[%s5 + $0x3c] sm:$0xf]
    %v742 = vld [vmem:[%s6] sm:$0x1]
    %v744 = vlaneseq
    %v745 = vshrl.u32 %v744, 7
    %v746 = vsub.s32 0, %v745
    %v747 = vrot.slane %v742, %v746
    %v765 = vunpack.c.l.b16 %v726
    %v766 = vunpack.c.l.b16 %v727
    %v767 = vunpack.c.l.b16 %v728
    %v768 = vunpack.c.l.b16 %v729
    %v769 = vunpack.c.l.b16 %v730
    %v770 = vunpack.c.l.b16 %v731
    %v771 = vunpack.c.l.b16 %v732
    %v772 = vunpack.c.l.b16 %v733
    %v773 = vunpack.c.l.b16 %v734
    %v774 = vunpack.c.l.b16 %v735
    %v775 = vunpack.c.l.b16 %v736
    %v776 = vunpack.c.l.b16 %v737
    %v777 = vunpack.c.l.b16 %v738
    %v778 = vunpack.c.l.b16 %v739
    %v779 = vunpack.c.l.b16 %v740
    %v780 = vunpack.c.l.b16 %v741
    %v781 = vpack.c.b16 %v766, %v765
    %v782 = vpack.c.b16 %v768, %v767
    %v783 = vpack.c.b16 %v770, %v769
    %v784 = vpack.c.b16 %v772, %v771
    %v785 = vpack.c.b16 %v774, %v773
    %v786 = vpack.c.b16 %v776, %v775
    %v787 = vpack.c.b16 %v778, %v777
    %v788 = vpack.c.b16 %v780, %v779
    %797 = vmatprep.subr.bf16.mxu0 0
    %798 = vmatpush1.bf16.msra.mxu0 %v788
    %799 = vmatprep.subr.bf16.mxu0 0
    %800 = vmatpush1.bf16.msra.mxu0 %v787
    %801 = vmatprep.subr.bf16.mxu0 0
    %802 = vmatpush1.bf16.msra.mxu0 %v786
    %803 = vmatprep.subr.bf16.mxu0 0
    %804 = vmatpush1.bf16.msra.mxu0 %v785
    %805 = vmatprep.subr.bf16.mxu0 0
    %806 = vmatpush1.bf16.msra.mxu0 %v784
    %807 = vmatprep.subr.bf16.mxu0 0
    %808 = vmatpush1.bf16.msra.mxu0 %v783
    %809 = vmatprep.subr.bf16.mxu0 0
    %810 = vmatpush1.bf16.msra.mxu0 %v782
    %811 = vmatprep.subr.bf16.mxu0 0
    %812 = vmatpush1.bf16.msra.mxu0 %v781
    %813 = vmatprep.subr.bf16.mxu0 0
    %814 = vmatpush2.bf16.msra.mxu0 0
    %815 = vmatprep.subr.bf16.mxu0 0
    %816 = vmatpush2.bf16.msra.mxu0 0
    %817 = vmatprep.subr.bf16.mxu0 0
    %818 = vmatpush2.bf16.msra.mxu0 0
    %819 = vmatprep.subr.bf16.mxu0 0
    %820 = vmatpush2.bf16.msra.mxu0 0
    %821 = vmatprep.subr.bf16.mxu0 0
    %822 = vmatpush2.bf16.msra.mxu0 0
    %823 = vmatprep.subr.bf16.mxu0 0
    %824 = vmatpush2.bf16.msra.mxu0 0
    %825 = vmatprep.subr.bf16.mxu0 0
    %826 = vmatpush2.bf16.msra.mxu0 0
    %827 = vmatprep.subr.bf16.mxu0 0
    %828 = vmatpush2.bf16.msra.mxu0 0
    %829 = vmatprep.mubr.bf16.mxu0 0
    %830 = vmatmul.mubr.bf16.gmra.mxu0 %v725
    %v831 = vpop.f32.mrf.mxu0
    %v832 = vadd.f32 %v747, %v831
    %v833 = vpop.f32.mrf.mxu0
    %v834 = vpop.f32.mrf.mxu0
    %v835 = vpop.f32.mrf.mxu0
    %836 = vdwg.mxu0
    %v837 = vmax.f32 %v832, 0.0
    %v838 = vpack.c.bf16 %v837, %v837
    %v839 = vld [vmem:[%s7] sm:$0xf]
    %v840 = vld [vmem:[%s7 + $0x4] sm:$0xf]
    %v841 = vld [vmem:[%s7 + $0x8] sm:$0xf]
    %v842 = vld [vmem:[%s7 + $0xc] sm:$0xf]
    %v843 = vld [vmem:[%s7 + $0x10] sm:$0xf]
    %v844 = vld [vmem:[%s7 + $0x14] sm:$0xf]
    %v845 = vld [vmem:[%s7 + $0x18] sm:$0xf]
    %v846 = vld [vmem:[%s7 + $0x1c] sm:$0xf]
    %v847 = vld [vmem:[%s7 + $0x20] sm:$0xf]
    %v848 = vld [vmem:[%s7 + $0x24] sm:$0xf]
    %v849 = vld [vmem:[%s7 + $0x28] sm:$0xf]
    %v850 = vld [vmem:[%s7 + $0x2c] sm:$0xf]
    %v851 = vld [vmem:[%s7 + $0x30] sm:$0xf]
    %v852 = vld [vmem:[%s7 + $0x34] sm:$0xf]
    %v853 = vld [vmem:[%s7 + $0x38] sm:$0xf]
    %v854 = vld [vmem:[%s7 + $0x3c] sm:$0xf]
    %v855 = vld [vmem:[%s8] sm:$0x1]
    %v857 = vlaneseq
    %v858 = vshrl.u32 %v857, 7
    %v859 = vsub.s32 0, %v858
    %v860 = vrot.slane %v855, %v859
    %v878 = vunpack.c.l.b16 %v839
    %v879 = vunpack.c.l.b16 %v840
    %v880 = vunpack.c.l.b16 %v841
    %v881 = vunpack.c.l.b16 %v842
    %v882 = vunpack.c.l.b16 %v843
    %v883 = vunpack.c.l.b16 %v844
    %v884 = vunpack.c.l.b16 %v845
    %v885 = vunpack.c.l.b16 %v846
    %v886 = vunpack.c.l.b16 %v847
    %v887 = vunpack.c.l.b16 %v848
    %v888 = vunpack.c.l.b16 %v849
    %v889 = vunpack.c.l.b16 %v850
    %v890 = vunpack.c.l.b16 %v851
    %v891 = vunpack.c.l.b16 %v852
    %v892 = vunpack.c.l.b16 %v853
    %v893 = vunpack.c.l.b16 %v854
    %v894 = vpack.c.b16 %v879, %v878
    %v895 = vpack.c.b16 %v881, %v880
    %v896 = vpack.c.b16 %v883, %v882
    %v897 = vpack.c.b16 %v885, %v884
    %v898 = vpack.c.b16 %v887, %v886
    %v899 = vpack.c.b16 %v889, %v888
    %v900 = vpack.c.b16 %v891, %v890
    %v901 = vpack.c.b16 %v893, %v892
    %910 = vmatprep.subr.bf16.mxu0 0
    %911 = vmatpush1.bf16.msra.mxu0 %v901
    %912 = vmatprep.subr.bf16.mxu0 0
    %913 = vmatpush1.bf16.msra.mxu0 %v900
    %914 = vmatprep.subr.bf16.mxu0 0
    %915 = vmatpush1.bf16.msra.mxu0 %v899
    %916 = vmatprep.subr.bf16.mxu0 0
    %917 = vmatpush1.bf16.msra.mxu0 %v898
    %918 = vmatprep.subr.bf16.mxu0 0
    %919 = vmatpush1.bf16.msra.mxu0 %v897
    %920 = vmatprep.subr.bf16.mxu0 0
    %921 = vmatpush1.bf16.msra.mxu0 %v896
    %922 = vmatprep.subr.bf16.mxu0 0
    %923 = vmatpush1.bf16.msra.mxu0 %v895
    %924 = vmatprep.subr.bf16.mxu0 0
    %925 = vmatpush1.bf16.msra.mxu0 %v894
    %926 = vmatprep.subr.bf16.mxu0 0
    %927 = vmatpush2.bf16.msra.mxu0 0
    %928 = vmatprep.subr.bf16.mxu0 0
    %929 = vmatpush2.bf16.msra.mxu0 0
    %930 = vmatprep.subr.bf16.mxu0 0
    %931 = vmatpush2.bf16.msra.mxu0 0
    %932 = vmatprep.subr.bf16.mxu0 0
    %933 = vmatpush2.bf16.msra.mxu0 0
    %934 = vmatprep.subr.bf16.mxu0 0
    %935 = vmatpush2.bf16.msra.mxu0 0
    %936 = vmatprep.subr.bf16.mxu0 0
    %937 = vmatpush2.bf16.msra.mxu0 0
    %938 = vmatprep.subr.bf16.mxu0 0
    %939 = vmatpush2.bf16.msra.mxu0 0
    %940 = vmatprep.subr.bf16.mxu0 0
    %941 = vmatpush2.bf16.msra.mxu0 0
    %942 = vmatprep.mubr.bf16.mxu0 0
    %943 = vmatmul.mubr.bf16.gmra.mxu0 %v838
    %v944 = vpop.f32.mrf.mxu0
    %v945 = vadd.f32 %v860, %v944
    %v946 = vpop.f32.mrf.mxu0
    %v947 = vpop.f32.mrf.mxu0
    %v948 = vpop.f32.mrf.mxu0
    %949 = vdwg.mxu0
    %vm950 = vcmask 80896
    %v951 = vsel %vm950, %v945, -inf
    %952 = vmax.xlane.f32.xlu0 %v951
    %v953 = vpop.xlane.xlu0 %952
    %v954 = vsub.f32 %v945, %v953
    %v955 = vmul.f32 %v954, 1.442695
    %v956 = vpow.pop %v955
    %v957 = vsel %vm950, %v956, 0.0
    %958 = vadd.xlane.f32.xlu0 %v957
    %v959 = vpop.xlane.xlu0 %958
    %v960 = vlog2.pop %v959
    %v961 = vmul.f32 %v960, 0.6931472
    %v962 = vsub.f32 %v954, %v961
    %963 = vst.msk [vmem:[#allocation2] sm:$0xff] %vm950, %v962
    // Predicated region
    $region38: #{net_forward.1} parent=1 // pred_check
      _
    $region39: #{net_forward.1} parent=1 // pred_check_branch
      %965 = sbr.rel (0) target = $region41
    $region40: #{net_forward.1} parent=1 // pred_region
      %s967 = ssub.s32 128, 128
      %968 = vsyncadd [#allocation3], %s967
      %s970 = sshll.u32 [#allocation2], 4
      %s971 = int_to_ptr.vmem [resolvable:$true] %s970
      %973 = dma.vmem_to_hbm [thread:$0]  %s971, 128, %s9, [#allocation3]
    $region41: #{net_forward.1} parent=1 // pred_fallthru
      _
    // Predicated region
    $region42: #{net_forward.1} parent=1 // pred_check
      _
    $region43: #{net_forward.1} parent=1 // pred_check_branch
      %975 = sbr.rel (0) target = $region45
    $region44: #{net_forward.1} parent=1 // pred_region
      %976 = dma.done [#allocation3], 128
    $region45: #{net_forward.1} parent=1 // pred_fallthru
      _
    %977 = vsyncpa [#allocation3], 1

</llo_original>
